<compile_context>
chip_gen: v7x
topology: tpu7x:2x2x1
jax: 0.10.0
libtpu: 0.0.40
codegen_flags: <defaults>
</compile_context>

<pallas_src>
import functools

import jax
import jax.numpy as jnp
from jax.experimental import pallas as pl
from jax.experimental.pallas import tpu as pltpu


# ------------------------------ Pallas kernel ------------------------------- #

def gcn_signnet_kernel(a_ref, a2_ref, x_ref, phi_ref, rho_ref, o_ref,
                       *, num_eigs, hidden, out_channels):
    f32 = jnp.float32
    E, H, C = num_eigs, hidden, out_channels
    EH = E * H
    N = a_ref.shape[0]

    A = a_ref[...]                                                  # [N, N]
    A2 = a2_ref[...]                                                # [N, N]

    # ---- phi layer 1 for ALL eigenvectors and both signs, lane-dense:
    #      ax = A @ X once; o = ax @ kron(I_E, phi_w1); sign pair folded into
    #      h = relu(o + b1) + relu(b1 - o)   (phi(+x) + phi(-x), pre-aggregation).
    ax = jnp.dot(A, x_ref[...], preferred_element_type=f32)         # [N, E]
    S_w = phi_ref[0:E, :]                                            # [E, EH]
    b1 = phi_ref[E:E + 1, :]                                         # [1, EH]
    o = jnp.dot(ax, S_w, preferred_element_type=f32)                 # [N, EH]
    h = jnp.maximum(o + b1, 0.0) + jnp.maximum(b1 - o, 0.0)          # [N, EH]

    # ---- fused phi layer 2 + rho layer 1:
    #      h1 = relu(A2 @ (h @ Wfold) + B1), Wfold = kron(I_E, phi_w2) @ rho_w1,
    #      B1 = rowsum(A)[:,None]*(2*tile(phi_b2) @ rho_w1) + rho_b1 (precomputed).
    Wfold = rho_ref[0:EH, 0:H]                                       # [EH, H]
    B1 = rho_ref[EH:EH + N, 0:H]                                     # [N, H]
    t = jnp.dot(h, Wfold, preferred_element_type=f32)                # [N, H]
    h1 = jnp.maximum(jnp.dot(A2, t, preferred_element_type=f32) + B1, 0.0)

    # ---- rho layer 2 (no activation).
    W2 = rho_ref[EH + N:EH + N + H, 0:C]                             # [H, C]
    b2 = rho_ref[EH + N + H:EH + N + H + 1, 0:C]                     # [1, C]
    u = jnp.dot(h1, W2, preferred_element_type=f32)                  # [N, C]
    o_ref[...] = (jnp.dot(A, u, preferred_element_type=f32)
                  + b2).astype(o_ref.dtype)


def gcn_signnet_forward(a_norm, a2, x, phi_slab, rho_slab, *, hidden,
                        out_channels):
    """Fused SignNet forward: x [N, num_eigs] -> [N, out_channels]."""
    N, num_eigs = x.shape
    vmem = pl.BlockSpec(memory_space=pltpu.MemorySpace.VMEM)
    kernel = functools.partial(gcn_signnet_kernel, num_eigs=num_eigs,
                               hidden=hidden, out_channels=out_channels)
    return pl.pallas_call(
        kernel,
        out_shape=jax.ShapeDtypeStruct((N, out_channels), jnp.float32),
        in_specs=[vmem] * 5,
        out_specs=vmem,
    )(a_norm, a2, x, phi_slab, rho_slab)


# ------------------------------- glue (JAX) --------------------------------- #

def normalized_adj(edge_index, num_nodes):
    """Dense GCN normalization: D^{-1/2} (A + I) D^{-1/2} (edges deduplicated)."""
    src, dst = edge_index[0], edge_index[1]
    A = jnp.zeros((num_nodes, num_nodes), jnp.float32).at[dst, src].set(1.0)
    A = A + jnp.eye(num_nodes, dtype=jnp.float32)
    deg = A.sum(axis=1)
    dinv = jax.lax.rsqrt(deg)
    return A * dinv[:, None] * dinv[None, :]


def _preprocess(a_norm, num_eigs, params):
    """Build the two kernel parameter slabs + A^2 (all fused into the jit)."""
    hi = jax.lax.Precision.HIGHEST
    f32 = jnp.float32
    E = num_eigs
    H = params["phi_w1"].shape[1]
    C = params["rho_w2"].shape[1]
    N = a_norm.shape[0]

    eyeE = jnp.eye(E, dtype=f32)
    S_w = jnp.kron(eyeE, params["phi_w1"])                    # [E, E*H]
    b1_t = jnp.tile(params["phi_b1"], (1, E))                 # [1, E*H]
    W2_bd = jnp.kron(eyeE, params["phi_w2"])                  # [E*H, E*P]
    c = 2.0 * jnp.tile(params["phi_b2"], (1, E))              # [1, E*P]

    Wfold = jnp.dot(W2_bd, params["rho_w1"], precision=hi)    # [E*H, H]
    cr = jnp.dot(c, params["rho_w1"], precision=hi)           # [1, H]

    A2 = jnp.dot(a_norm, a_norm, precision=hi)                # [N, N]
    B1 = (a_norm.sum(axis=1, keepdims=True) * cr
          + params["rho_b1"])                                 # [N, H]

    phi_slab = jnp.concatenate([S_w, b1_t], axis=0)           # [E+1, E*H]

    Wc = max(H, C)
    def padw(m):
        return jnp.pad(m, ((0, 0), (0, Wc - m.shape[1])))
    rho_slab = jnp.concatenate(
        [padw(Wfold), padw(B1), padw(params["rho_w2"]),
         padw(params["rho_b2"])], axis=0)                     # [E*H+N+H+1, Wc]
    return A2, phi_slab, rho_slab, H, C


def init_params(key, num_eigs, hidden_channels, out_channels):
    phi_out_dim = hidden_channels // num_eigs
    ks = jax.random.split(key, 4)

    def lin(k, fan_in, fan_out):
        return (jax.random.normal(k, (fan_in, fan_out), jnp.float32)
                * (1.0 / jnp.sqrt(jnp.maximum(fan_in, 1)).astype(jnp.float32)))

    return {
        # phi = GCN(1, hidden, phi_out_dim), 2 layers
        "phi_w1": lin(ks[0], 1, hidden_channels),
        "phi_b1": jnp.zeros((1, hidden_channels), jnp.float32),
        "phi_w2": lin(ks[1], hidden_channels, phi_out_dim),
        "phi_b2": jnp.zeros((1, phi_out_dim), jnp.float32),
        # rho = GCN(num_eigs * phi_out_dim, hidden, out_channels), 2 layers
        "rho_w1": lin(ks[2], num_eigs * phi_out_dim, hidden_channels),
        "rho_b1": jnp.zeros((1, hidden_channels), jnp.float32),
        "rho_w2": lin(ks[3], hidden_channels, out_channels),
        "rho_b2": jnp.zeros((1, out_channels), jnp.float32),
    }


@jax.jit
def gcn_signnet_encode(x, edge_index, params):
    """x: [N, num_eigs] eigenvector features -> [N, out_channels]."""
    num_nodes, num_eigs = x.shape
    a_norm = normalized_adj(edge_index, num_nodes)
    a2, phi_slab, rho_slab, hidden, out_channels = _preprocess(
        a_norm, num_eigs, params)
    return gcn_signnet_forward(a_norm, a2, x, phi_slab, rho_slab,
                               hidden=hidden, out_channels=out_channels)


# Pure-JAX reference (mirrors the PyTorch module) for a correctness check.
def gcn_signnet_ref(x, edge_index, params):
    hi = jax.lax.Precision.HIGHEST
    N = x.shape[0]
    a = normalized_adj(edge_index, N)

    def layer(h, w, b, relu):
        out = jnp.dot(a, jnp.dot(h, w, precision=hi), precision=hi) + b
        return jnp.maximum(out, 0.0) if relu else out

    xe = jnp.transpose(x)[:, :, None]                         # [E, N, 1]

    def phi(v):                                               # 2-layer GCN, batched over E
        h = jnp.maximum(
            jnp.einsum("nm,emf,fk->enk", a, v, params["phi_w1"], precision=hi)
            + params["phi_b1"], 0.0)
        return (jnp.einsum("nm,emk,kp->enp", a, h, params["phi_w2"], precision=hi)
                + params["phi_b2"])

    z = phi(xe) + phi(-xe)                                    # [E, N, P]
    z = jnp.transpose(z, (1, 0, 2)).reshape(N, -1)            # [N, E*P]
    h = layer(z, params["rho_w1"], params["rho_b1"], True)
    return layer(h, params["rho_w2"], params["rho_b2"], False)


# ----------------------------------- main ------------------------------------ #

if __name__ == "__main__":
    NUM_NODES = 16
    NUM_EIGS = 8
    HIDDEN = 32
    OUT_CHANNELS = 16

    key = jax.random.PRNGKey(0)
    k_x, k_p = jax.random.split(key)

    # node features: [N, num_eigs] (Laplacian eigenvector entries)
    x = jax.random.normal(k_x, (NUM_NODES, NUM_EIGS), jnp.float32)

    # undirected ring graph, both directions -> edge_index [2, 2N]
    i = jnp.arange(NUM_NODES, dtype=jnp.int32)
    j = (i + 1) % NUM_NODES
    edge_index = jnp.stack(
        [jnp.concatenate([i, j]), jnp.concatenate([j, i])], axis=0)

    params = init_params(k_p, NUM_EIGS, HIDDEN, OUT_CHANNELS)

    out = gcn_signnet_encode(x, edge_index, params)
    jax.block_until_ready(out)
    assert out.shape == (NUM_NODES, OUT_CHANNELS), out.shape

    ref = gcn_signnet_ref(x, edge_index, params)
    assert jnp.allclose(out, ref, rtol=1e-2, atol=1e-2), \
        float(jnp.max(jnp.abs(out - ref)))

    print("KERNEL_OK")
</pallas_src>

<mosaic_0001>
module attributes {stable_mosaic.version = 11 : i64} {
  func.func @gcn_signnet_kernel(%arg0: memref<16x16xf32, #tpu.memory_space<vmem>>, %arg1: memref<16x16xf32, #tpu.memory_space<vmem>>, %arg2: memref<16x8xf32, #tpu.memory_space<vmem>>, %arg3: memref<9x256xf32, #tpu.memory_space<vmem>>, %arg4: memref<305x32xf32, #tpu.memory_space<vmem>>, %arg5: memref<16x16xf32, #tpu.memory_space<vmem>>) attributes {dimension_semantics = [], scalar_prefetch = 0 : i64, scratch_operands = 0 : i64, tpu.core_type = #tpu.core_type<tc>} {
    %c0 = arith.constant 0 : index
    %c0_0 = arith.constant 0 : index
    %0 = vector.load %arg0[%c0, %c0_0] : memref<16x16xf32, #tpu.memory_space<vmem>>, vector<16x16xf32>
    %c0_1 = arith.constant 0 : index
    %c0_2 = arith.constant 0 : index
    %1 = vector.load %arg1[%c0_1, %c0_2] : memref<16x16xf32, #tpu.memory_space<vmem>>, vector<16x16xf32>
    %c0_3 = arith.constant 0 : index
    %c0_4 = arith.constant 0 : index
    %2 = vector.load %arg2[%c0_3, %c0_4] : memref<16x8xf32, #tpu.memory_space<vmem>>, vector<16x8xf32>
    %cst = arith.constant dense<0.000000e+00> : vector<16x8xf32>
    %3 = tpu.matmul %0, %2, %cst {dimension_numbers = #tpu.dot_dimension_numbers<[1], [0], [0], [1], [0, 0, 1, 1], [], []>} : vector<16x16xf32>, vector<16x8xf32>, vector<16x8xf32> -> vector<16x8xf32>
    %c0_5 = arith.constant 0 : index
    %c0_6 = arith.constant 0 : index
    %4 = vector.load %arg3[%c0_5, %c0_6] : memref<9x256xf32, #tpu.memory_space<vmem>>, vector<8x256xf32>
    %c8 = arith.constant 8 : index
    %c0_7 = arith.constant 0 : index
    %5 = vector.load %arg3[%c8, %c0_7] : memref<9x256xf32, #tpu.memory_space<vmem>>, vector<1x256xf32>
    %cst_8 = arith.constant dense<0.000000e+00> : vector<16x256xf32>
    %6 = tpu.matmul %3, %4, %cst_8 {dimension_numbers = #tpu.dot_dimension_numbers<[1], [0], [0], [1], [0, 0, 1, 1], [], []>} : vector<16x8xf32>, vector<8x256xf32>, vector<16x256xf32> -> vector<16x256xf32>
    %7 = vector.broadcast %5 : vector<1x256xf32> to vector<16x256xf32>
    %8 = arith.addf %6, %7 : vector<16x256xf32>
    %cst_9 = arith.constant 0.000000e+00 : f32
    %9 = vector.broadcast %cst_9 : f32 to vector<16x256xf32>
    %10 = arith.maximumf %8, %9 : vector<16x256xf32>
    %11 = vector.broadcast %5 : vector<1x256xf32> to vector<16x256xf32>
    %12 = arith.subf %11, %6 : vector<16x256xf32>
    %cst_10 = arith.constant 0.000000e+00 : f32
    %13 = vector.broadcast %cst_10 : f32 to vector<16x256xf32>
    %14 = arith.maximumf %12, %13 : vector<16x256xf32>
    %15 = arith.addf %10, %14 : vector<16x256xf32>
    %c0_11 = arith.constant 0 : index
    %c0_12 = arith.constant 0 : index
    %16 = vector.load %arg4[%c0_11, %c0_12] : memref<305x32xf32, #tpu.memory_space<vmem>>, vector<256x32xf32>
    %c256 = arith.constant 256 : index
    %c0_13 = arith.constant 0 : index
    %17 = vector.load %arg4[%c256, %c0_13] : memref<305x32xf32, #tpu.memory_space<vmem>>, vector<16x32xf32>
    %cst_14 = arith.constant dense<0.000000e+00> : vector<16x32xf32>
    %18 = tpu.matmul %15, %16, %cst_14 {dimension_numbers = #tpu.dot_dimension_numbers<[1], [0], [0], [1], [0, 0, 1, 1], [], []>} : vector<16x256xf32>, vector<256x32xf32>, vector<16x32xf32> -> vector<16x32xf32>
    %cst_15 = arith.constant dense<0.000000e+00> : vector<16x32xf32>
    %19 = tpu.matmul %1, %18, %cst_15 {dimension_numbers = #tpu.dot_dimension_numbers<[1], [0], [0], [1], [0, 0, 1, 1], [], []>} : vector<16x16xf32>, vector<16x32xf32>, vector<16x32xf32> -> vector<16x32xf32>
    %20 = arith.addf %19, %17 : vector<16x32xf32>
    %cst_16 = arith.constant 0.000000e+00 : f32
    %21 = vector.broadcast %cst_16 : f32 to vector<16x32xf32>
    %22 = arith.maximumf %20, %21 : vector<16x32xf32>
    %c272 = arith.constant 272 : index
    %c0_17 = arith.constant 0 : index
    %23 = vector.load %arg4[%c272, %c0_17] : memref<305x32xf32, #tpu.memory_space<vmem>>, vector<32x16xf32>
    %c304 = arith.constant 304 : index
    %c0_18 = arith.constant 0 : index
    %24 = vector.load %arg4[%c304, %c0_18] : memref<305x32xf32, #tpu.memory_space<vmem>>, vector<1x16xf32>
    %cst_19 = arith.constant dense<0.000000e+00> : vector<16x16xf32>
    %25 = tpu.matmul %22, %23, %cst_19 {dimension_numbers = #tpu.dot_dimension_numbers<[1], [0], [0], [1], [0, 0, 1, 1], [], []>} : vector<16x32xf32>, vector<32x16xf32>, vector<16x16xf32> -> vector<16x16xf32>
    %cst_20 = arith.constant dense<0.000000e+00> : vector<16x16xf32>
    %26 = tpu.matmul %0, %25, %cst_20 {dimension_numbers = #tpu.dot_dimension_numbers<[1], [0], [0], [1], [0, 0, 1, 1], [], []>} : vector<16x16xf32>, vector<16x16xf32>, vector<16x16xf32> -> vector<16x16xf32>
    %27 = vector.broadcast %24 : vector<1x16xf32> to vector<16x16xf32>
    %28 = arith.addf %26, %27 : vector<16x16xf32>
    %c0_21 = arith.constant 0 : index
    %c0_22 = arith.constant 0 : index
    %29 = vector.load %arg5[%c0_21, %c0_22] : memref<16x16xf32, #tpu.memory_space<vmem>>, vector<16x16xf32>
    tpu.vector_store %arg5[%c0_21, %c0_22], %28 {strides = array<i32>} : memref<16x16xf32, #tpu.memory_space<vmem>>, vector<16x16xf32>,
    return
  }
}

</mosaic_0001>

<llo_original>
// kernel: gcn_signnet_encode.1
$region0: #{gcn_signnet_encode.1}
  #allocation0 [shape = 'u32[]', space=smem, size = 0x4, offset = 0x4, fixed_abs, tag = 'smem constant byte address 0x4 - core index']
  #allocation1 [shape = 'u32[144,128]{1,0:T(1,128)}', space=vmem, size = 0x12000, scoped, tag = 'internal scratch']
  %s0 = inlined_call_operand.vmem [shape: f32[16,16], index: 0, kind: input, shape index: {}]
  %s1 = inlined_call_operand.vmem [shape: f32[16,16], index: 1, kind: input, shape index: {}]
  %s2 = inlined_call_operand.vmem [shape: f32[16,8], index: 2, kind: input, shape index: {}]
  %s3 = inlined_call_operand.vmem [shape: f32[9,256], index: 3, kind: input, shape index: {}]
  %s4 = inlined_call_operand.vmem [shape: f32[305,32], index: 4, kind: input, shape index: {}]
  %s5 = inlined_call_operand.hbm [shape: f32[16,16], index: 5, kind: output, shape index: {}]
  %s6 = sld [smem:[#allocation0]]
  $region30: #{gcn_signnet_encode.1} parent=0
    _
  %s8 = ssub.s32 1, %s6
  %s9 = scalar_select 0, %s8, %s6
  $region1: #{gcn_signnet_encode.1} parent=0
    #allocation2 [shape = 'u8[8192]{0}', space=vmem, size = 0x2000, scoped, tag = 'output window, operand 0, single buffered']
    #allocation3 [shape = 's32[1]{0}', space=sflag, size = 0x4, scoped, tag = 'scoped memory for gcn_signnet_encode.1']
    %10 = vsyncpa [#allocation3], 0
    // Predicated region
    $region2: #{gcn_signnet_encode.1} parent=1 // pred_check
      _
    $region3: #{gcn_signnet_encode.1} parent=1 // pred_check_branch
      %12 = sbr.rel (0) target = $region5
    $region4: #{gcn_signnet_encode.1} parent=1 // pred_region
      _
    $region5: #{gcn_signnet_encode.1} parent=1 // pred_fallthru
      _
    // Predicated region
    $region6: #{gcn_signnet_encode.1} parent=1 // pred_check
      _
    $region7: #{gcn_signnet_encode.1} parent=1 // pred_check_branch
      %14 = sbr.rel (0) target = $region9
    $region8: #{gcn_signnet_encode.1} parent=1 // pred_region
      _
    $region9: #{gcn_signnet_encode.1} parent=1 // pred_fallthru
      _
    // Predicated region
    $region10: #{gcn_signnet_encode.1} parent=1 // pred_check
      _
    $region11: #{gcn_signnet_encode.1} parent=1 // pred_check_branch
      %16 = sbr.rel (0) target = $region13
    $region12: #{gcn_signnet_encode.1} parent=1 // pred_region
      _
    $region13: #{gcn_signnet_encode.1} parent=1 // pred_fallthru
      _
    // Predicated region
    $region14: #{gcn_signnet_encode.1} parent=1 // pred_check
      _
    $region15: #{gcn_signnet_encode.1} parent=1 // pred_check_branch
      %18 = sbr.rel (0) target = $region17
    $region16: #{gcn_signnet_encode.1} parent=1 // pred_region
      _
    $region17: #{gcn_signnet_encode.1} parent=1 // pred_fallthru
      _
    // Predicated region
    $region18: #{gcn_signnet_encode.1} parent=1 // pred_check
      _
    $region19: #{gcn_signnet_encode.1} parent=1 // pred_check_branch
      %20 = sbr.rel (0) target = $region21
    $region20: #{gcn_signnet_encode.1} parent=1 // pred_region
      _
    $region21: #{gcn_signnet_encode.1} parent=1 // pred_fallthru
      _
    %v21 = vld [vmem:[%s0] sm:$0xff]
    %v22 = vld [vmem:[%s0 + $0x8] sm:$0xff]
    %v23 = vld [vmem:[%s1] sm:$0xff]
    %v24 = vld [vmem:[%s1 + $0x8] sm:$0xff]
    %v25 = vld [vmem:[%s2] sm:$0xff]
    %v26 = vld [vmem:[%s2 + $0x8] sm:$0xff]
    %vm27 = vcmask 130048
    %v29 = vsel %vm27, %v21, 0
    %v32 = vsel %vm27, %v22, 0
    %34 = vmatprep.subr.mxu0 0.0
    %35 = vmatpush1.msra.mxu0 %v25
    %36 = vmatprep.subr.mxu0 0.0
    %37 = vmatpush1.msra.mxu0 %v26
    %38 = vmatprep.subr.mxu0 0.0
    %39 = vmatpush1.msra.mxu0 0.0
    %40 = vmatprep.subr.mxu0 0.0
    %41 = vmatpush1.msra.mxu0 0.0
    %42 = vmatprep.subr.mxu0 0.0
    %43 = vmatpush1.msra.mxu0 0.0
    %44 = vmatprep.subr.mxu0 0.0
    %45 = vmatpush1.msra.mxu0 0.0
    %46 = vmatprep.subr.mxu0 0.0
    %47 = vmatpush1.msra.mxu0 0.0
    %48 = vmatprep.subr.mxu0 0.0
    %49 = vmatpush1.msra.mxu0 0.0
    %50 = vmatprep.subr.mxu0 0.0
    %51 = vmatpush1.msra.mxu0 0.0
    %52 = vmatprep.subr.mxu0 0.0
    %53 = vmatpush1.msra.mxu0 0.0
    %54 = vmatprep.subr.mxu0 0.0
    %55 = vmatpush1.msra.mxu0 0.0
    %56 = vmatprep.subr.mxu0 0.0
    %57 = vmatpush1.msra.mxu0 0.0
    %58 = vmatprep.subr.mxu0 0.0
    %59 = vmatpush1.msra.mxu0 0.0
    %60 = vmatprep.subr.mxu0 0.0
    %61 = vmatpush1.msra.mxu0 0.0
    %62 = vmatprep.subr.mxu0 0.0
    %63 = vmatpush1.msra.mxu0 0.0
    %64 = vmatprep.subr.mxu0 0.0
    %65 = vmatpush1.msra.mxu0 0.0
    %66 = vmatprep.subr.mxu0 0.0
    %67 = vmatpush1.msra.mxu0 0.0
    %68 = vmatprep.subr.mxu0 0.0
    %69 = vmatpush1.msra.mxu0 0.0
    %70 = vmatprep.subr.mxu0 0.0
    %71 = vmatpush1.msra.mxu0 0.0
    %72 = vmatprep.subr.mxu0 0.0
    %73 = vmatpush1.msra.mxu0 0.0
    %74 = vmatprep.subr.mxu0 0.0
    %75 = vmatpush1.msra.mxu0 0.0
    %76 = vmatprep.subr.mxu0 0.0
    %77 = vmatpush1.msra.mxu0 0.0
    %78 = vmatprep.subr.mxu0 0.0
    %79 = vmatpush1.msra.mxu0 0.0
    %80 = vmatprep.subr.mxu0 0.0
    %81 = vmatpush1.msra.mxu0 0.0
    %82 = vmatprep.subr.mxu0 0.0
    %83 = vmatpush1.msra.mxu0 0.0
    %84 = vmatprep.subr.mxu0 0.0
    %85 = vmatpush1.msra.mxu0 0.0
    %86 = vmatprep.subr.mxu0 0.0
    %87 = vmatpush1.msra.mxu0 0.0
    %88 = vmatprep.subr.mxu0 0.0
    %89 = vmatpush1.msra.mxu0 0.0
    %90 = vmatprep.subr.mxu0 0.0
    %91 = vmatpush1.msra.mxu0 0.0
    %92 = vmatprep.subr.mxu0 0.0
    %93 = vmatpush1.msra.mxu0 0.0
    %94 = vmatprep.subr.mxu0 0.0
    %95 = vmatpush1.msra.mxu0 0.0
    %96 = vmatprep.subr.mxu0 0.0
    %97 = vmatpush1.msra.mxu0 0.0
    %98 = vmatprep.mubr.f32.mxu0 0.0
    %99 = vmatmul.mubr.f32.gmra.mrb[0].mxu0 %v29
    %v100 = vpop.f32.mrb[0].mxu0
    %v101 = vadd.f32 0.0, %v100
    %v102 = vpop.f32.mrb[0].mxu0
    %103 = vmatprep.mubr.f32.mxu0 0.0
    %104 = vmatmul.mubr.f32.gmra.mrb[0].mxu0 %v32
    %v105 = vpop.f32.mrb[0].mxu0
    %v106 = vadd.f32 0.0, %v105
    %v107 = vpop.f32.mrb[0].mxu0
    %108 = vdwg.mxu0
    %v109 = vld [vmem:[%s3] sm:$0xff]
    %v110 = vld [vmem:[%s3 + $0x8] sm:$0xff]
    %s111 = scalar_lea.vmem %s3, 16
    %v112 = vld [vmem:[%s111] ss:$8 sm:$0x3]
    %vm113 = vcmask 64512
    %v115 = vsel %vm113, %v101, 0
    %v118 = vsel %vm113, %v106, 0
    %120 = vmatprep.subr.mxu0 %v110
    %121 = vmatpush1.msra.mxu0 %v109
    %122 = vmatprep.subr.mxu0 0.0
    %123 = vmatpush1.msra.mxu0 0.0
    %124 = vmatprep.subr.mxu0 0.0
    %125 = vmatpush1.msra.mxu0 0.0
    %126 = vmatprep.subr.mxu0 0.0
    %127 = vmatpush1.msra.mxu0 0.0
    %128 = vmatprep.subr.mxu0 0.0
    %129 = vmatpush1.msra.mxu0 0.0
    %130 = vmatprep.subr.mxu0 0.0
    %131 = vmatpush1.msra.mxu0 0.0
    %132 = vmatprep.subr.mxu0 0.0
    %133 = vmatpush1.msra.mxu0 0.0
    %134 = vmatprep.subr.mxu0 0.0
    %135 = vmatpush1.msra.mxu0 0.0
    %136 = vmatprep.subr.mxu0 0.0
    %137 = vmatpush1.msra.mxu0 0.0
    %138 = vmatprep.subr.mxu0 0.0
    %139 = vmatpush1.msra.mxu0 0.0
    %140 = vmatprep.subr.mxu0 0.0
    %141 = vmatpush1.msra.mxu0 0.0
    %142 = vmatprep.subr.mxu0 0.0
    %143 = vmatpush1.msra.mxu0 0.0
    %144 = vmatprep.subr.mxu0 0.0
    %145 = vmatpush1.msra.mxu0 0.0
    %146 = vmatprep.subr.mxu0 0.0
    %147 = vmatpush1.msra.mxu0 0.0
    %148 = vmatprep.subr.mxu0 0.0
    %149 = vmatpush1.msra.mxu0 0.0
    %150 = vmatprep.subr.mxu0 0.0
    %151 = vmatpush1.msra.mxu0 0.0
    %152 = vmatprep.subr.mxu0 0.0
    %153 = vmatpush1.msra.mxu0 0.0
    %154 = vmatprep.subr.mxu0 0.0
    %155 = vmatpush1.msra.mxu0 0.0
    %156 = vmatprep.subr.mxu0 0.0
    %157 = vmatpush1.msra.mxu0 0.0
    %158 = vmatprep.subr.mxu0 0.0
    %159 = vmatpush1.msra.mxu0 0.0
    %160 = vmatprep.subr.mxu0 0.0
    %161 = vmatpush1.msra.mxu0 0.0
    %162 = vmatprep.subr.mxu0 0.0
    %163 = vmatpush1.msra.mxu0 0.0
    %164 = vmatprep.subr.mxu0 0.0
    %165 = vmatpush1.msra.mxu0 0.0
    %166 = vmatprep.subr.mxu0 0.0
    %167 = vmatpush1.msra.mxu0 0.0
    %168 = vmatprep.subr.mxu0 0.0
    %169 = vmatpush1.msra.mxu0 0.0
    %170 = vmatprep.subr.mxu0 0.0
    %171 = vmatpush1.msra.mxu0 0.0
    %172 = vmatprep.subr.mxu0 0.0
    %173 = vmatpush1.msra.mxu0 0.0
    %174 = vmatprep.subr.mxu0 0.0
    %175 = vmatpush1.msra.mxu0 0.0
    %176 = vmatprep.subr.mxu0 0.0
    %177 = vmatpush1.msra.mxu0 0.0
    %178 = vmatprep.subr.mxu0 0.0
    %179 = vmatpush1.msra.mxu0 0.0
    %180 = vmatprep.subr.mxu0 0.0
    %181 = vmatpush1.msra.mxu0 0.0
    %182 = vmatprep.subr.mxu0 0.0
    %183 = vmatpush1.msra.mxu0 0.0
    %184 = vmatprep.mubr.f32.mxu0 0.0
    %185 = vmatmul.mubr.f32.gmra.mrb[0].mxu0 %v115
    %v186 = vpop.f32.mrb[0].mxu0
    %v187 = vadd.f32 0.0, %v186
    %v188 = vpop.f32.mrb[0].mxu0
    %v189 = vadd.f32 0.0, %v188
    %190 = vmatprep.mubr.f32.mxu0 0.0
    %191 = vmatmul.mubr.f32.gmra.mrb[0].mxu0 %v118
    %v192 = vpop.f32.mrb[0].mxu0
    %v193 = vadd.f32 0.0, %v192
    %v194 = vpop.f32.mrb[0].mxu0
    %v195 = vadd.f32 0.0, %v194
    %196 = vdwg.mxu0
    %v198 = vlaneseq
    %v199 = vshrl.u32 %v198, 7
    %v200 = vsub.s32 0, %v199
    %v201 = vrot.slane %v112, %v200
    %v202 = vlaneseq
    %v203 = vshrl.u32 %v202, 7
    %v204 = vsub.s32 1, %v203
    %v205 = vrot.slane %v112, %v204
    %v208 = vadd.f32 %v187, %v201
    %v209 = vadd.f32 %v189, %v205
    %v210 = vadd.f32 %v193, %v201
    %v211 = vadd.f32 %v195, %v205
    %v212 = vmax.f32 %v208, 0.0
    %v213 = vmax.f32 %v209, 0.0
    %v214 = vmax.f32 %v210, 0.0
    %v215 = vmax.f32 %v211, 0.0
    %v216 = vsub.f32 %v201, %v187
    %v217 = vsub.f32 %v205, %v189
    %v218 = vsub.f32 %v201, %v193
    %v219 = vsub.f32 %v205, %v195
    %v220 = vmax.f32 %v216, 0.0
    %v221 = vmax.f32 %v217, 0.0
    %v222 = vmax.f32 %v218, 0.0
    %v223 = vmax.f32 %v219, 0.0
    %v224 = vadd.f32 %v212, %v220
    %v225 = vadd.f32 %v213, %v221
    %v226 = vadd.f32 %v214, %v222
    %v227 = vadd.f32 %v215, %v223
    %v228 = vld [vmem:[%s4] sm:$0xff]
    %v229 = vld [vmem:[%s4 + $0x8] sm:$0xff]
    %v230 = vld [vmem:[%s4 + $0x10] sm:$0xff]
    %v231 = vld [vmem:[%s4 + $0x18] sm:$0xff]
    %v232 = vld [vmem:[%s4 + $0x20] sm:$0xff]
    %v233 = vld [vmem:[%s4 + $0x28] sm:$0xff]
    %v234 = vld [vmem:[%s4 + $0x30] sm:$0xff]
    %v235 = vld [vmem:[%s4 + $0x38] sm:$0xff]
    %v236 = vld [vmem:[%s4 + $0x40] sm:$0xff]
    %v237 = vld [vmem:[%s4 + $0x48] sm:$0xff]
    %v238 = vld [vmem:[%s4 + $0x50] sm:$0xff]
    %v239 = vld [vmem:[%s4 + $0x58] sm:$0xff]
    %v240 = vld [vmem:[%s4 + $0x60] sm:$0xff]
    %v241 = vld [vmem:[%s4 + $0x68] sm:$0xff]
    %v242 = vld [vmem:[%s4 + $0x70] sm:$0xff]
    %v243 = vld [vmem:[%s4 + $0x78] sm:$0xff]
    %v244 = vld [vmem:[%s4 + $0x80] sm:$0xff]
    %v245 = vld [vmem:[%s4 + $0x88] sm:$0xff]
    %v246 = vld [vmem:[%s4 + $0x90] sm:$0xff]
    %v247 = vld [vmem:[%s4 + $0x98] sm:$0xff]
    %v248 = vld [vmem:[%s4 + $0xa0] sm:$0xff]
    %v249 = vld [vmem:[%s4 + $0xa8] sm:$0xff]
    %v250 = vld [vmem:[%s4 + $0xb0] sm:$0xff]
    %v251 = vld [vmem:[%s4 + $0xb8] sm:$0xff]
    %v252 = vld [vmem:[%s4 + $0xc0] sm:$0xff]
    %v253 = vld [vmem:[%s4 + $0xc8] sm:$0xff]
    %v254 = vld [vmem:[%s4 + $0xd0] sm:$0xff]
    %v255 = vld [vmem:[%s4 + $0xd8] sm:$0xff]
    %v256 = vld [vmem:[%s4 + $0xe0] sm:$0xff]
    %v257 = vld [vmem:[%s4 + $0xe8] sm:$0xff]
    %v258 = vld [vmem:[%s4 + $0xf0] sm:$0xff]
    %v259 = vld [vmem:[%s4 + $0xf8] sm:$0xff]
    %v260 = vld [vmem:[%s4 + $0x100] sm:$0xff]
    %v261 = vld [vmem:[%s4 + $0x108] sm:$0xff]
    %262 = vmatprep.subr.mxu0 0.0
    %263 = vmatpush1.msra.mxu0 %v228
    %264 = vmatprep.subr.mxu0 0.0
    %265 = vmatpush1.msra.mxu0 %v229
    %266 = vmatprep.subr.mxu0 0.0
    %267 = vmatpush1.msra.mxu0 %v230
    %268 = vmatprep.subr.mxu0 0.0
    %269 = vmatpush1.msra.mxu0 %v231
    %270 = vmatprep.subr.mxu0 0.0
    %271 = vmatpush1.msra.mxu0 %v232
    %272 = vmatprep.subr.mxu0 0.0
    %273 = vmatpush1.msra.mxu0 %v233
    %274 = vmatprep.subr.mxu0 0.0
    %275 = vmatpush1.msra.mxu0 %v234
    %276 = vmatprep.subr.mxu0 0.0
    %277 = vmatpush1.msra.mxu0 %v235
    %278 = vmatprep.subr.mxu0 0.0
    %279 = vmatpush1.msra.mxu0 %v236
    %280 = vmatprep.subr.mxu0 0.0
    %281 = vmatpush1.msra.mxu0 %v237
    %282 = vmatprep.subr.mxu0 0.0
    %283 = vmatpush1.msra.mxu0 %v238
    %284 = vmatprep.subr.mxu0 0.0
    %285 = vmatpush1.msra.mxu0 %v239
    %286 = vmatprep.subr.mxu0 0.0
    %287 = vmatpush1.msra.mxu0 %v240
    %288 = vmatprep.subr.mxu0 0.0
    %289 = vmatpush1.msra.mxu0 %v241
    %290 = vmatprep.subr.mxu0 0.0
    %291 = vmatpush1.msra.mxu0 %v242
    %292 = vmatprep.subr.mxu0 0.0
    %293 = vmatpush1.msra.mxu0 %v243
    %294 = vmatprep.subr.mxu0 0.0
    %295 = vmatpush1.msra.mxu0 %v244
    %296 = vmatprep.subr.mxu0 0.0
    %297 = vmatpush1.msra.mxu0 %v245
    %298 = vmatprep.subr.mxu0 0.0
    %299 = vmatpush1.msra.mxu0 %v246
    %300 = vmatprep.subr.mxu0 0.0
    %301 = vmatpush1.msra.mxu0 %v247
    %302 = vmatprep.subr.mxu0 0.0
    %303 = vmatpush1.msra.mxu0 %v248
    %304 = vmatprep.subr.mxu0 0.0
    %305 = vmatpush1.msra.mxu0 %v249
    %306 = vmatprep.subr.mxu0 0.0
    %307 = vmatpush1.msra.mxu0 %v250
    %308 = vmatprep.subr.mxu0 0.0
    %309 = vmatpush1.msra.mxu0 %v251
    %310 = vmatprep.subr.mxu0 0.0
    %311 = vmatpush1.msra.mxu0 %v252
    %312 = vmatprep.subr.mxu0 0.0
    %313 = vmatpush1.msra.mxu0 %v253
    %314 = vmatprep.subr.mxu0 0.0
    %315 = vmatpush1.msra.mxu0 %v254
    %316 = vmatprep.subr.mxu0 0.0
    %317 = vmatpush1.msra.mxu0 %v255
    %318 = vmatprep.subr.mxu0 0.0
    %319 = vmatpush1.msra.mxu0 %v256
    %320 = vmatprep.subr.mxu0 0.0
    %321 = vmatpush1.msra.mxu0 %v257
    %322 = vmatprep.subr.mxu0 0.0
    %323 = vmatpush1.msra.mxu0 %v258
    %324 = vmatprep.subr.mxu0 0.0
    %325 = vmatpush1.msra.mxu0 %v259
    %326 = vmatprep.mubr.f32.mxu0 %v225
    %327 = vmatmul.mubr.f32.gmra.mrb[0].mxu0 %v224
    %v328 = vpop.f32.mrb[0].mxu0
    %v329 = vadd.f32 0.0, %v328
    %v330 = vpop.f32.mrb[0].mxu0
    %331 = vmatprep.mubr.f32.mxu0 %v227
    %332 = vmatmul.mubr.f32.gmra.mrb[0].mxu0 %v226
    %v333 = vpop.f32.mrb[0].mxu0
    %v334 = vadd.f32 0.0, %v333
    %v335 = vpop.f32.mrb[0].mxu0
    %336 = vdwg.mxu0
    %v338 = vsel %vm27, %v23, 0
    %v341 = vsel %vm27, %v24, 0
    %343 = vmatprep.subr.mxu0 0.0
    %344 = vmatpush1.msra.mxu0 %v329
    %345 = vmatprep.subr.mxu0 0.0
    %346 = vmatpush1.msra.mxu0 %v334
    %347 = vmatprep.subr.mxu0 0.0
    %348 = vmatpush1.msra.mxu0 0.0
    %349 = vmatprep.subr.mxu0 0.0
    %350 = vmatpush1.msra.mxu0 0.0
    %351 = vmatprep.subr.mxu0 0.0
    %352 = vmatpush1.msra.mxu0 0.0
    %353 = vmatprep.subr.mxu0 0.0
    %354 = vmatpush1.msra.mxu0 0.0
    %355 = vmatprep.subr.mxu0 0.0
    %356 = vmatpush1.msra.mxu0 0.0
    %357 = vmatprep.subr.mxu0 0.0
    %358 = vmatpush1.msra.mxu0 0.0
    %359 = vmatprep.subr.mxu0 0.0
    %360 = vmatpush1.msra.mxu0 0.0
    %361 = vmatprep.subr.mxu0 0.0
    %362 = vmatpush1.msra.mxu0 0.0
    %363 = vmatprep.subr.mxu0 0.0
    %364 = vmatpush1.msra.mxu0 0.0
    %365 = vmatprep.subr.mxu0 0.0
    %366 = vmatpush1.msra.mxu0 0.0
    %367 = vmatprep.subr.mxu0 0.0
    %368 = vmatpush1.msra.mxu0 0.0
    %369 = vmatprep.subr.mxu0 0.0
    %370 = vmatpush1.msra.mxu0 0.0
    %371 = vmatprep.subr.mxu0 0.0
    %372 = vmatpush1.msra.mxu0 0.0
    %373 = vmatprep.subr.mxu0 0.0
    %374 = vmatpush1.msra.mxu0 0.0
    %375 = vmatprep.subr.mxu0 0.0
    %376 = vmatpush1.msra.mxu0 0.0
    %377 = vmatprep.subr.mxu0 0.0
    %378 = vmatpush1.msra.mxu0 0.0
    %379 = vmatprep.subr.mxu0 0.0
    %380 = vmatpush1.msra.mxu0 0.0
    %381 = vmatprep.subr.mxu0 0.0
    %382 = vmatpush1.msra.mxu0 0.0
    %383 = vmatprep.subr.mxu0 0.0
    %384 = vmatpush1.msra.mxu0 0.0
    %385 = vmatprep.subr.mxu0 0.0
    %386 = vmatpush1.msra.mxu0 0.0
    %387 = vmatprep.subr.mxu0 0.0
    %388 = vmatpush1.msra.mxu0 0.0
    %389 = vmatprep.subr.mxu0 0.0
    %390 = vmatpush1.msra.mxu0 0.0
    %391 = vmatprep.subr.mxu0 0.0
    %392 = vmatpush1.msra.mxu0 0.0
    %393 = vmatprep.subr.mxu0 0.0
    %394 = vmatpush1.msra.mxu0 0.0
    %395 = vmatprep.subr.mxu0 0.0
    %396 = vmatpush1.msra.mxu0 0.0
    %397 = vmatprep.subr.mxu0 0.0
    %398 = vmatpush1.msra.mxu0 0.0
    %399 = vmatprep.subr.mxu0 0.0
    %400 = vmatpush1.msra.mxu0 0.0
    %401 = vmatprep.subr.mxu0 0.0
    %402 = vmatpush1.msra.mxu0 0.0
    %403 = vmatprep.subr.mxu0 0.0
    %404 = vmatpush1.msra.mxu0 0.0
    %405 = vmatprep.subr.mxu0 0.0
    %406 = vmatpush1.msra.mxu0 0.0
    %407 = vmatprep.mubr.f32.mxu0 0.0
    %408 = vmatmul.mubr.f32.gmra.mrb[0].mxu0 %v338
    %v409 = vpop.f32.mrb[0].mxu0
    %v410 = vadd.f32 %v260, %v409
    %v411 = vpop.f32.mrb[0].mxu0
    %412 = vmatprep.mubr.f32.mxu0 0.0
    %413 = vmatmul.mubr.f32.gmra.mrb[0].mxu0 %v341
    %v414 = vpop.f32.mrb[0].mxu0
    %v415 = vadd.f32 %v261, %v414
    %v416 = vpop.f32.mrb[0].mxu0
    %417 = vdwg.mxu0
    %v418 = vmax.f32 %v410, 0.0
    %v419 = vmax.f32 %v415, 0.0
    %v420 = vld [vmem:[%s4 + $0x110] sm:$0xff]
    %v421 = vld [vmem:[%s4 + $0x118] sm:$0xff]
    %v422 = vld [vmem:[%s4 + $0x120] sm:$0xff]
    %v423 = vld [vmem:[%s4 + $0x128] sm:$0xff]
    %v424 = vld [vmem:[%s4 + $0x130] sm:$0x1]
    %vm425 = vcmask 261120
    %v427 = vsel %vm425, %v418, 0
    %v430 = vsel %vm425, %v419, 0
    %432 = vmatprep.subr.mxu0 0.0
    %433 = vmatpush1.msra.mxu0 %v420
    %434 = vmatprep.subr.mxu0 0.0
    %435 = vmatpush1.msra.mxu0 %v421
    %436 = vmatprep.subr.mxu0 0.0
    %437 = vmatpush1.msra.mxu0 %v422
    %438 = vmatprep.subr.mxu0 0.0
    %439 = vmatpush1.msra.mxu0 %v423
    %440 = vmatprep.subr.mxu0 0.0
    %441 = vmatpush1.msra.mxu0 0.0
    %442 = vmatprep.subr.mxu0 0.0
    %443 = vmatpush1.msra.mxu0 0.0
    %444 = vmatprep.subr.mxu0 0.0
    %445 = vmatpush1.msra.mxu0 0.0
    %446 = vmatprep.subr.mxu0 0.0
    %447 = vmatpush1.msra.mxu0 0.0
    %448 = vmatprep.subr.mxu0 0.0
    %449 = vmatpush1.msra.mxu0 0.0
    %450 = vmatprep.subr.mxu0 0.0
    %451 = vmatpush1.msra.mxu0 0.0
    %452 = vmatprep.subr.mxu0 0.0
    %453 = vmatpush1.msra.mxu0 0.0
    %454 = vmatprep.subr.mxu0 0.0
    %455 = vmatpush1.msra.mxu0 0.0
    %456 = vmatprep.subr.mxu0 0.0
    %457 = vmatpush1.msra.mxu0 0.0
    %458 = vmatprep.subr.mxu0 0.0
    %459 = vmatpush1.msra.mxu0 0.0
    %460 = vmatprep.subr.mxu0 0.0
    %461 = vmatpush1.msra.mxu0 0.0
    %462 = vmatprep.subr.mxu0 0.0
    %463 = vmatpush1.msra.mxu0 0.0
    %464 = vmatprep.subr.mxu0 0.0
    %465 = vmatpush1.msra.mxu0 0.0
    %466 = vmatprep.subr.mxu0 0.0
    %467 = vmatpush1.msra.mxu0 0.0
    %468 = vmatprep.subr.mxu0 0.0
    %469 = vmatpush1.msra.mxu0 0.0
    %470 = vmatprep.subr.mxu0 0.0
    %471 = vmatpush1.msra.mxu0 0.0
    %472 = vmatprep.subr.mxu0 0.0
    %473 = vmatpush1.msra.mxu0 0.0
    %474 = vmatprep.subr.mxu0 0.0
    %475 = vmatpush1.msra.mxu0 0.0
    %476 = vmatprep.subr.mxu0 0.0
    %477 = vmatpush1.msra.mxu0 0.0
    %478 = vmatprep.subr.mxu0 0.0
    %479 = vmatpush1.msra.mxu0 0.0
    %480 = vmatprep.subr.mxu0 0.0
    %481 = vmatpush1.msra.mxu0 0.0
    %482 = vmatprep.subr.mxu0 0.0
    %483 = vmatpush1.msra.mxu0 0.0
    %484 = vmatprep.subr.mxu0 0.0
    %485 = vmatpush1.msra.mxu0 0.0
    %486 = vmatprep.subr.mxu0 0.0
    %487 = vmatpush1.msra.mxu0 0.0
    %488 = vmatprep.subr.mxu0 0.0
    %489 = vmatpush1.msra.mxu0 0.0
    %490 = vmatprep.subr.mxu0 0.0
    %491 = vmatpush1.msra.mxu0 0.0
    %492 = vmatprep.subr.mxu0 0.0
    %493 = vmatpush1.msra.mxu0 0.0
    %494 = vmatprep.subr.mxu0 0.0
    %495 = vmatpush1.msra.mxu0 0.0
    %496 = vmatprep.mubr.f32.mxu0 0.0
    %497 = vmatmul.mubr.f32.gmra.mrb[0].mxu0 %v427
    %v498 = vpop.f32.mrb[0].mxu0
    %v499 = vadd.f32 0.0, %v498
    %v500 = vpop.f32.mrb[0].mxu0
    %501 = vmatprep.mubr.f32.mxu0 0.0
    %502 = vmatmul.mubr.f32.gmra.mrb[0].mxu0 %v430
    %v503 = vpop.f32.mrb[0].mxu0
    %v504 = vadd.f32 0.0, %v503
    %v505 = vpop.f32.mrb[0].mxu0
    %506 = vdwg.mxu0
    %v507 = vlaneseq
    %v508 = vshrl.u32 %v507, 7
    %v509 = vsub.s32 0, %v508
    %v510 = vrot.slane %v424, %v509
    %511 = vmatprep.subr.mxu0 0.0
    %512 = vmatpush1.msra.mxu0 %v499
    %513 = vmatprep.subr.mxu0 0.0
    %514 = vmatpush1.msra.mxu0 %v504
    %515 = vmatprep.subr.mxu0 0.0
    %516 = vmatpush1.msra.mxu0 0.0
    %517 = vmatprep.subr.mxu0 0.0
    %518 = vmatpush1.msra.mxu0 0.0
    %519 = vmatprep.subr.mxu0 0.0
    %520 = vmatpush1.msra.mxu0 0.0
    %521 = vmatprep.subr.mxu0 0.0
    %522 = vmatpush1.msra.mxu0 0.0
    %523 = vmatprep.subr.mxu0 0.0
    %524 = vmatpush1.msra.mxu0 0.0
    %525 = vmatprep.subr.mxu0 0.0
    %526 = vmatpush1.msra.mxu0 0.0
    %527 = vmatprep.subr.mxu0 0.0
    %528 = vmatpush1.msra.mxu0 0.0
    %529 = vmatprep.subr.mxu0 0.0
    %530 = vmatpush1.msra.mxu0 0.0
    %531 = vmatprep.subr.mxu0 0.0
    %532 = vmatpush1.msra.mxu0 0.0
    %533 = vmatprep.subr.mxu0 0.0
    %534 = vmatpush1.msra.mxu0 0.0
    %535 = vmatprep.subr.mxu0 0.0
    %536 = vmatpush1.msra.mxu0 0.0
    %537 = vmatprep.subr.mxu0 0.0
    %538 = vmatpush1.msra.mxu0 0.0
    %539 = vmatprep.subr.mxu0 0.0
    %540 = vmatpush1.msra.mxu0 0.0
    %541 = vmatprep.subr.mxu0 0.0
    %542 = vmatpush1.msra.mxu0 0.0
    %543 = vmatprep.subr.mxu0 0.0
    %544 = vmatpush1.msra.mxu0 0.0
    %545 = vmatprep.subr.mxu0 0.0
    %546 = vmatpush1.msra.mxu0 0.0
    %547 = vmatprep.subr.mxu0 0.0
    %548 = vmatpush1.msra.mxu0 0.0
    %549 = vmatprep.subr.mxu0 0.0
    %550 = vmatpush1.msra.mxu0 0.0
    %551 = vmatprep.subr.mxu0 0.0
    %552 = vmatpush1.msra.mxu0 0.0
    %553 = vmatprep.subr.mxu0 0.0
    %554 = vmatpush1.msra.mxu0 0.0
    %555 = vmatprep.subr.mxu0 0.0
    %556 = vmatpush1.msra.mxu0 0.0
    %557 = vmatprep.subr.mxu0 0.0
    %558 = vmatpush1.msra.mxu0 0.0
    %559 = vmatprep.subr.mxu0 0.0
    %560 = vmatpush1.msra.mxu0 0.0
    %561 = vmatprep.subr.mxu0 0.0
    %562 = vmatpush1.msra.mxu0 0.0
    %563 = vmatprep.subr.mxu0 0.0
    %564 = vmatpush1.msra.mxu0 0.0
    %565 = vmatprep.subr.mxu0 0.0
    %566 = vmatpush1.msra.mxu0 0.0
    %567 = vmatprep.subr.mxu0 0.0
    %568 = vmatpush1.msra.mxu0 0.0
    %569 = vmatprep.subr.mxu0 0.0
    %570 = vmatpush1.msra.mxu0 0.0
    %571 = vmatprep.subr.mxu0 0.0
    %572 = vmatpush1.msra.mxu0 0.0
    %573 = vmatprep.subr.mxu0 0.0
    %574 = vmatpush1.msra.mxu0 0.0
    %575 = vmatprep.mubr.f32.mxu0 0.0
    %576 = vmatmul.mubr.f32.gmra.mrb[0].mxu0 %v29
    %v577 = vpop.f32.mrb[0].mxu0
    %v578 = vadd.f32 %v510, %v577
    %v579 = vpop.f32.mrb[0].mxu0
    %580 = vmatprep.mubr.f32.mxu0 0.0
    %581 = vmatmul.mubr.f32.gmra.mrb[0].mxu0 %v32
    %v582 = vpop.f32.mrb[0].mxu0
    %v583 = vadd.f32 %v510, %v582
    %v584 = vpop.f32.mrb[0].mxu0
    %585 = vdwg.mxu0
    %586 = vst.msk [vmem:[#allocation2] sm:$0xff] %vm27, %v578
    %587 = vst.msk [vmem:[#allocation2 + $0x8] sm:$0xff] %vm27, %v583
    // Predicated region
    $region22: #{gcn_signnet_encode.1} parent=1 // pred_check
      _
    $region23: #{gcn_signnet_encode.1} parent=1 // pred_check_branch
      %589 = sbr.rel (0) target = $region25
    $region24: #{gcn_signnet_encode.1} parent=1 // pred_region
      %s591 = ssub.s32 256, 256
      %592 = vsyncadd [#allocation3], %s591
      %s593 = sshll.u32 [#allocation2], 4
      %s594 = int_to_ptr.vmem [resolvable:$true] %s593
      %599 = dma.vmem_to_hbm [thread:$0]  %s594, 256, %s5, [#allocation3], 128, 128, 8
    $region25: #{gcn_signnet_encode.1} parent=1 // pred_fallthru
      _
    // Predicated region
    $region26: #{gcn_signnet_encode.1} parent=1 // pred_check
      _
    $region27: #{gcn_signnet_encode.1} parent=1 // pred_check_branch
      %601 = sbr.rel (0) target = $region29
    $region28: #{gcn_signnet_encode.1} parent=1 // pred_region
      %602 = dma.done [#allocation3], 256
    $region29: #{gcn_signnet_encode.1} parent=1 // pred_fallthru
      _
    %603 = vsyncpa [#allocation3], 1

</llo_original>
